<compile_context>
chip_gen: v7x
topology: tpu7x:2x2x1
jax: 0.10.0
libtpu: 0.0.40
codegen_flags: <defaults>
</compile_context>

<pallas_src>
import functools

import jax
import jax.numpy as jnp
from jax.experimental import pallas as pl
from jax.experimental.pallas import tpu as pltpu


def _round_up(v, m):
    return -(-v // m) * m


def _cdiv(a, b):
    return -(-a // b)


# ---------------------------------------------------------------------------
# Kernels: one (1, tm, tn) output tile = sum_k x[t0+k : t0+k+tm, :] @ W[k] (+ bias),
# accumulated locally in f32.  x_ref holds the whole (segment + halo, C_in) slab for the
# current pseudo-batch element (resident across the j / i sweeps); w_ref holds the per-tap
# (K, C_in, tn) weight slab (resident across the whole run when n_j == 1).
# ---------------------------------------------------------------------------
def _conv_bias_kernel(x_ref, w_ref, b_ref, o_ref, *, ksize, tm, halo):
    i = pl.program_id(2)
    t0 = pl.multiple_of(i * tm, tm)                       # aligned dynamic start
    xw = x_ref[0, pl.ds(t0, tm + halo), :]                # (tm+halo, C_in) single aligned load
    acc = jnp.dot(xw[0:tm, :], w_ref[0, :, :], preferred_element_type=jnp.float32)
    for k in range(1, ksize):                             # static taps: shifted value slices
        acc += jnp.dot(xw[k:k + tm, :], w_ref[k, :, :], preferred_element_type=jnp.float32)
    acc += b_ref[...].astype(jnp.float32)                 # (1, tn) broadcast, f32 bias
    o_ref[0, :, :] = acc.astype(o_ref.dtype)


def _conv_kernel(x_ref, w_ref, o_ref, *, ksize, tm, halo):
    i = pl.program_id(2)
    t0 = pl.multiple_of(i * tm, tm)
    xw = x_ref[0, pl.ds(t0, tm + halo), :]
    acc = jnp.dot(xw[0:tm, :], w_ref[0, :, :], preferred_element_type=jnp.float32)
    for k in range(1, ksize):
        acc += jnp.dot(xw[k:k + tm, :], w_ref[k, :, :], preferred_element_type=jnp.float32)
    o_ref[0, :, :] = acc.astype(o_ref.dtype)


# ---------------------------------------------------------------------------
# Tile / segment planning (balanced cdiv tiling, explicit VMEM budgets).
# ---------------------------------------------------------------------------
def _plan_tiles(T, c_in, c_out, ksize, in_isz, out_isz, *,
                tm_max=512,
                x_budget=8 << 20,      # double-buffered activation slab
                w_budget=12 << 20,     # double-buffered (K, C_in, tn) weight slab
                o_budget=4 << 20):     # double-buffered (tm, tn) output tile
    c_pad = _round_up(c_in, 128)                       # lane-dense contraction
    n_full = _round_up(c_out, 128)                     # lane-dense output channels
    halo = _round_up(max(ksize - 1, 1), 8)             # sublane-aligned halo (8 for K=3)
    t_align = 16 if in_isz < 4 else 8                  # packed-sublane alignment for bf16

    # Output-channel tile: prefer a single resident weight tile (n_j == 1) so activations are
    # read from HBM exactly once; otherwise balance tiles (padding capped at 127 lanes).
    tn_cap = max(128, (w_budget // (2 * ksize * c_pad * in_isz)) // 128 * 128)
    n_j = _cdiv(n_full, min(tn_cap, n_full))
    tn = _round_up(_cdiv(n_full, n_j), 128)
    n_pad = n_j * tn

    # Time tile: as large as the output-block budget allows, then rebalanced (no dead padding).
    tm_cap = max(t_align, (o_budget // (2 * tn * out_isz)) // t_align * t_align)
    tm = min(tm_max, tm_cap, _round_up(T, t_align))
    n_i_total = _cdiv(T, tm)
    tm = _round_up(_cdiv(T, n_i_total), t_align)

    # Segment: number of time tiles whose activations stay VMEM-resident per pseudo-batch elem.
    rows_cap = x_budget // (2 * c_pad * in_isz)
    n_i_seg = max(1, min(n_i_total, max(1, (rows_cap - halo) // max(tm, 1))))
    n_seg = _cdiv(n_i_total, n_i_seg)
    n_i_seg = _cdiv(n_i_total, n_seg)
    seg = n_i_seg * tm

    return dict(c_pad=c_pad, n_pad=n_pad, tn=tn, n_j=n_j, tm=tm, halo=halo,
                n_i_seg=n_i_seg, n_seg=n_seg, seg=seg)


# ---------------------------------------------------------------------------
# Public op.
# ---------------------------------------------------------------------------
def conv1d_op(x, weight, bias=None, *, stride=1, groups=1,
              compute_dtype=jnp.bfloat16,
              tm_max=512, x_budget=8 << 20, w_budget=12 << 20, o_budget=4 << 20):
    """ConvolutionOp forward (encoder, "same" symmetric padding).

    Args:
      x:      (batch, seq, c_in) float32
      weight: (c_out, c_in, kernel_size) float32  (torch Conv1d layout)
      bias:   (c_out,) float32 or None
      stride, groups: only 1 supported.
      compute_dtype: MXU operand dtype (default bf16; accumulation and bias stay f32).
                     Use jnp.float32 for torch-f32 parity.
    Returns:
      (batch, seq, c_out) with x.dtype
    """
    if groups != 1:
        raise NotImplementedError("groups > 1 not supported")   # TODO(synk): grouped conv
    if stride != 1:
        raise NotImplementedError("stride != 1 not supported")   # TODO(synk): strided conv

    b, t, c_in = x.shape
    c_out, c_in_w, ksize = weight.shape
    assert c_in_w == c_in

    cdt = jnp.dtype(compute_dtype) if compute_dtype is not None else jnp.dtype(x.dtype)
    out_dtype = jnp.dtype(x.dtype)
    in_isz, out_isz = cdt.itemsize, out_dtype.itemsize

    p = _plan_tiles(t, c_in, c_out, ksize, in_isz, out_isz, tm_max=tm_max,
                    x_budget=x_budget, w_budget=w_budget, o_budget=o_budget)
    c_pad, n_pad, tn, n_j = p["c_pad"], p["n_pad"], p["tn"], p["n_j"]
    tm, halo, n_i_seg, n_seg, seg = p["tm"], p["halo"], p["n_i_seg"], p["n_seg"], p["seg"]

    # Zero-pad: symmetric "same" padding on the left, halo/alignment padding on the right,
    # lane padding on channels.  This is the ONLY activation copy the wrapper makes.
    pad_l = (ksize - 1) // 2
    t_full = n_seg * seg + halo
    x_pad = jnp.pad(x, ((0, 0), (pad_l, t_full - pad_l - t), (0, c_pad - c_in))).astype(cdt)

    if n_seg == 1:
        x_seg = x_pad
        b_seg = b
    else:
        # Halo-overlapped segments as pseudo-batch elements (only when the sequence is too long
        # for the VMEM budget; duplication is just `halo` rows per segment).
        x_seg = jnp.stack(
            [x_pad[:, s * seg:s * seg + seg + halo, :] for s in range(n_seg)], axis=1
        ).reshape(b * n_seg, seg + halo, c_pad)
        b_seg = b * n_seg

    # torch (c_out, c_in, K) -> per-tap slabs (K, c_in, c_out), padded + cast.
    w_seg = jnp.pad(jnp.transpose(weight, (2, 1, 0)),
                    ((0, 0), (0, c_pad - c_in), (0, n_pad - c_out))).astype(cdt)

    grid = (n_j, b_seg, n_i_seg)
    x_spec = pl.BlockSpec((1, seg + halo, c_pad), lambda j, bb, i: (bb, 0, 0))
    w_spec = pl.BlockSpec((ksize, c_pad, tn), lambda j, bb, i: (0, 0, j))
    o_spec = pl.BlockSpec((1, tm, tn), lambda j, bb, i: (bb, i, j))

    # Advisory cost: x re-read n_j times (usually n_j == 1), weights/bias/output once.
    flops = 2 * b_seg * seg * (ksize * c_pad) * n_pad
    bytes_accessed = (n_j * x_seg.size * in_isz
                      + w_seg.size * in_isz
                      + b_seg * seg * n_pad * out_isz
                      + (n_pad * 4 if bias is not None else 0))
    cost = pl.CostEstimate(flops=int(flops), transcendentals=0,
                           bytes_accessed=int(bytes_accessed))

    # Explicit VMEM budget (double buffers + in-kernel temporaries), with headroom; keeps us
    # inside v5e/v6e/v7x scoped limits while allowing larger-than-default footprints.
    footprint = (2 * (seg + halo) * c_pad * in_isz            # activation slab
                 + 2 * ksize * c_pad * tn * in_isz            # weight slab
                 + 2 * tm * tn * out_isz                      # output tile
                 + 2 * 8 * tn * 4                             # bias tile
                 + (ksize + 1) * (tm + halo) * c_pad * in_isz  # shifted-tap temporaries
                 + tm * tn * 4)                               # f32 accumulator value
    vmem_limit = int(min(max(32 << 20, footprint + (16 << 20)), 56 << 20))
    cparams = pltpu.CompilerParams(
        dimension_semantics=("parallel", "parallel", "parallel"),
        vmem_limit_bytes=vmem_limit)

    out_shape = jax.ShapeDtypeStruct((b_seg, seg, n_pad), out_dtype)

    if bias is not None:
        bp = jnp.pad(bias.astype(jnp.float32), (0, n_pad - c_out)).reshape(1, n_pad)
        bias_spec = pl.BlockSpec((1, tn), lambda j, bb, i: (0, j))
        kern = functools.partial(_conv_bias_kernel, ksize=ksize, tm=tm, halo=halo)
        out = pl.pallas_call(
            kern, out_shape=out_shape, grid=grid,
            in_specs=[x_spec, w_spec, bias_spec], out_specs=o_spec,
            compiler_params=cparams, cost_estimate=cost,
        )(x_seg, w_seg, bp)
    else:
        kern = functools.partial(_conv_kernel, ksize=ksize, tm=tm, halo=halo)
        out = pl.pallas_call(
            kern, out_shape=out_shape, grid=grid,
            in_specs=[x_spec, w_spec], out_specs=o_spec,
            compiler_params=cparams, cost_estimate=cost,
        )(x_seg, w_seg)

    return out.reshape(b, n_seg * seg, n_pad)[:, :t, :c_out]


if __name__ == "__main__":
    # Small shapes consistent with the module: (batch, seq, hidden), hidden == in == out.
    batch, seq, hidden = 2, 16, 32
    kernel_size, stride, groups = 3, 1, 1

    key = jax.random.PRNGKey(0)
    kx, kw, kb = jax.random.split(key, 3)
    x = jax.random.normal(kx, (batch, seq, hidden), dtype=jnp.float32)
    weight = jax.random.normal(kw, (hidden, hidden, kernel_size), dtype=jnp.float32) * 0.1
    bias = jax.random.normal(kb, (hidden,), dtype=jnp.float32) * 0.1

    def conv_ref(xv, wv, bv):
        pad_l = (kernel_size - 1) // 2
        pad_r = kernel_size - 1 - pad_l
        y = jax.lax.conv_general_dilated(
            xv, jnp.transpose(wv, (2, 1, 0)),
            window_strides=(stride,), padding=((pad_l, pad_r),),
            dimension_numbers=("NWC", "WIO", "NWC"),
            precision=jax.lax.Precision.HIGHEST)
        return y if bv is None else y + bv

    y_ref = conv_ref(x, weight, bias)

    # f32 MXU operands (torch-parity path); tolerance allows for MXU f32 pass modes.
    y_f32 = conv1d_op(x, weight, bias, stride=stride, groups=groups,
                      compute_dtype=jnp.float32)
    jax.block_until_ready(y_f32)
    assert y_f32.shape == (batch, seq, hidden)
    assert jnp.allclose(y_f32, y_ref, atol=2e-2, rtol=2e-2)

    # Default bf16 MXU operands, f32 accumulation.
    y_bf16 = conv1d_op(x, weight, bias, stride=stride, groups=groups)
    jax.block_until_ready(y_bf16)
    assert jnp.allclose(y_bf16, y_ref, atol=1e-1, rtol=1e-1)

    # No-bias kernel variant (bias operand dropped from the pallas_call).
    y_nb = conv1d_op(x, weight, None, compute_dtype=jnp.float32)
    jax.block_until_ready(y_nb)
    assert jnp.allclose(y_nb, y_ref - bias, atol=2e-2, rtol=2e-2)

    # Multi-tile exercise: tiny VMEM budgets force n_j=2 output-channel tiles, 2 time tiles per
    # segment and 2 halo-overlapped segments, at still-small shapes.
    b2, t2, h2 = 2, 128, 160
    k2 = jax.random.split(key, 6)
    x2 = jax.random.normal(k2[3], (b2, t2, h2), dtype=jnp.float32)
    w2 = jax.random.normal(k2[4], (h2, h2, kernel_size), dtype=jnp.float32) * 0.1
    bz2 = jax.random.normal(k2[5], (h2,), dtype=jnp.float32) * 0.1
    y2 = conv1d_op(x2, w2, bz2, compute_dtype=jnp.float32,
                   x_budget=200_000, w_budget=800_000, o_budget=32_768)
    jax.block_until_ready(y2)
    y2_ref = jax.lax.conv_general_dilated(
        x2, jnp.transpose(w2, (2, 1, 0)), window_strides=(1,), padding=((1, 1),),
        dimension_numbers=("NWC", "WIO", "NWC"),
        precision=jax.lax.Precision.HIGHEST) + bz2
    assert y2.shape == (b2, t2, h2)
    assert jnp.allclose(y2, y2_ref, atol=2e-2, rtol=2e-2)

    print("KERNEL_OK")
</pallas_src>

<mosaic_0001>
module attributes {stable_mosaic.version = 11 : i64} {
  func.func @_conv_bias_kernel(%arg0: i32, %arg1: i32, %arg2: i32, %arg3: memref<1x24x128xf32, #tpu.memory_space<vmem>>, %arg4: memref<3x128x128xf32, #tpu.memory_space<vmem>>, %arg5: memref<1x128xf32, #tpu.memory_space<vmem>>, %arg6: memref<1x16x128xf32, #tpu.memory_space<vmem>>) attributes {dimension_semantics = [#tpu.dimension_semantics<parallel>, #tpu.dimension_semantics<parallel>, #tpu.dimension_semantics<parallel>], iteration_bounds = array<i64: 1, 2, 1>, scalar_prefetch = 0 : i64, scratch_operands = 0 : i64, tpu.core_type = #tpu.core_type<tc>, window_params = [{transform_indices = @transform_0, window_bounds = array<i64: 1, 24, 128>}, {transform_indices = @transform_1, window_bounds = array<i64: 3, 128, 128>}, {transform_indices = @transform_2, window_bounds = array<i64: 1, 128>}, {transform_indices = @transform_3, window_bounds = array<i64: 1, 16, 128>}]} {
    %c16_i32 = arith.constant 16 : i32
    %0 = arith.muli %arg2, %c16_i32 : i32
    %1 = tpu.assume_multiple %0, 16 : i32
    %c0 = arith.constant 0 : index
    %2 = arith.index_cast %1 : i32 to index
    %c0_0 = arith.constant 0 : index
    %3 = vector.load %arg3[%c0, %2, %c0_0] : memref<1x24x128xf32, #tpu.memory_space<vmem>>, vector<1x24x128xf32>
    %4 = vector.shape_cast %3 : vector<1x24x128xf32> to vector<24x128xf32>
    %5 = vector.extract_strided_slice %4 {offsets = [0, 0], sizes = [16, 128], strides = [1, 1]} : vector<24x128xf32> to vector<16x128xf32>
    %c0_1 = arith.constant 0 : index
    %c0_2 = arith.constant 0 : index
    %c0_3 = arith.constant 0 : index
    %6 = vector.load %arg4[%c0_1, %c0_2, %c0_3] : memref<3x128x128xf32, #tpu.memory_space<vmem>>, vector<1x128x128xf32>
    %7 = vector.shape_cast %6 : vector<1x128x128xf32> to vector<128x128xf32>
    %cst = arith.constant dense<0.000000e+00> : vector<16x128xf32>
    %8 = tpu.matmul %5, %7, %cst {dimension_numbers = #tpu.dot_dimension_numbers<[1], [0], [0], [1], [0, 0, 1, 1], [], []>} : vector<16x128xf32>, vector<128x128xf32>, vector<16x128xf32> -> vector<16x128xf32>
    %9 = vector.extract_strided_slice %4 {offsets = [1, 0], sizes = [16, 128], strides = [1, 1]} : vector<24x128xf32> to vector<16x128xf32>
    %c1 = arith.constant 1 : index
    %c0_4 = arith.constant 0 : index
    %c0_5 = arith.constant 0 : index
    %10 = vector.load %arg4[%c1, %c0_4, %c0_5] : memref<3x128x128xf32, #tpu.memory_space<vmem>>, vector<1x128x128xf32>
    %11 = vector.shape_cast %10 : vector<1x128x128xf32> to vector<128x128xf32>
    %cst_6 = arith.constant dense<0.000000e+00> : vector<16x128xf32>
    %12 = tpu.matmul %9, %11, %cst_6 {dimension_numbers = #tpu.dot_dimension_numbers<[1], [0], [0], [1], [0, 0, 1, 1], [], []>} : vector<16x128xf32>, vector<128x128xf32>, vector<16x128xf32> -> vector<16x128xf32>
    %13 = arith.addf %8, %12 : vector<16x128xf32>
    %14 = vector.extract_strided_slice %4 {offsets = [2, 0], sizes = [16, 128], strides = [1, 1]} : vector<24x128xf32> to vector<16x128xf32>
    %c2 = arith.constant 2 : index
    %c0_7 = arith.constant 0 : index
    %c0_8 = arith.constant 0 : index
    %15 = vector.load %arg4[%c2, %c0_7, %c0_8] : memref<3x128x128xf32, #tpu.memory_space<vmem>>, vector<1x128x128xf32>
    %16 = vector.shape_cast %15 : vector<1x128x128xf32> to vector<128x128xf32>
    %cst_9 = arith.constant dense<0.000000e+00> : vector<16x128xf32>
    %17 = tpu.matmul %14, %16, %cst_9 {dimension_numbers = #tpu.dot_dimension_numbers<[1], [0], [0], [1], [0, 0, 1, 1], [], []>} : vector<16x128xf32>, vector<128x128xf32>, vector<16x128xf32> -> vector<16x128xf32>
    %18 = arith.addf %13, %17 : vector<16x128xf32>
    %c0_10 = arith.constant 0 : index
    %c0_11 = arith.constant 0 : index
    %19 = vector.load %arg5[%c0_10, %c0_11] : memref<1x128xf32, #tpu.memory_space<vmem>>, vector<1x128xf32>
    %20 = vector.broadcast %19 : vector<1x128xf32> to vector<16x128xf32>
    %21 = arith.addf %18, %20 : vector<16x128xf32>
    %c0_12 = arith.constant 0 : index
    %c0_13 = arith.constant 0 : index
    %c0_14 = arith.constant 0 : index
    %22 = vector.load %arg6[%c0_12, %c0_13, %c0_14] : memref<1x16x128xf32, #tpu.memory_space<vmem>>, vector<1x16x128xf32>
    %23 = vector.shape_cast %22 : vector<1x16x128xf32> to vector<16x128xf32>
    %24 = vector.shape_cast %21 : vector<16x128xf32> to vector<1x16x128xf32>
    tpu.vector_store %arg6[%c0_12, %c0_13, %c0_14], %24 {strides = array<i32>} : memref<1x16x128xf32, #tpu.memory_space<vmem>>, vector<1x16x128xf32>,
    return
  }
  func.func @transform_0(%arg0: i32, %arg1: i32, %arg2: i32) -> (i32, i32, i32) {
    %c0_i32 = arith.constant 0 : i32
    %c0_i32_0 = arith.constant 0 : i32
    %c0_i32_1 = arith.constant 0 : i32
    return %arg1, %c0_i32, %c0_i32_0 : i32, i32, i32
  }
  func.func @transform_1(%arg0: i32, %arg1: i32, %arg2: i32) -> (i32, i32, i32) {
    %c0_i32 = arith.constant 0 : i32
    %c0_i32_0 = arith.constant 0 : i32
    %c0_i32_1 = arith.constant 0 : i32
    return %c0_i32, %c0_i32_0, %arg0 : i32, i32, i32
  }
  func.func @transform_2(%arg0: i32, %arg1: i32, %arg2: i32) -> (i32, i32) {
    %c0_i32 = arith.constant 0 : i32
    %c0_i32_0 = arith.constant 0 : i32
    return %c0_i32, %arg0 : i32, i32
  }
  func.func @transform_3(%arg0: i32, %arg1: i32, %arg2: i32) -> (i32, i32, i32) {
    %c0_i32 = arith.constant 0 : i32
    return %arg1, %arg2, %arg0 : i32, i32, i32
  }
}

</mosaic_0001>

<llo_original>
// kernel: tpu_custom_call.1
$region0: #{tpu_custom_call.1}
  #allocation0 [shape = 'u32[]', space=smem, size = 0x4, offset = 0x4, fixed_abs, tag = 'smem constant byte address 0x4 - core index']
  #allocation1 [shape = 'u32[144,128]{1,0:T(1,128)}', space=vmem, size = 0x12000, scoped, tag = 'internal scratch']
  %s0 = inlined_call_operand.hbm [shape: f32[2,24,128], index: 0, kind: input, shape index: {}]
  %s1 = inlined_call_operand.hbm [shape: f32[3,128,128], index: 1, kind: input, shape index: {}]
  %s2 = inlined_call_operand.vmem [shape: f32[1,128], index: 2, kind: input, shape index: {}]
  %s3 = inlined_call_operand.hbm [shape: f32[2,16,128], index: 3, kind: output, shape index: {}]
  %s4 = sld [smem:[#allocation0]]
  $region53: #{tpu_custom_call.1} parent=0
    _
  %s6 = ssub.s32 1, %s4
  %s7 = scalar_select 0, %s6, %s4
  $region1: #{tpu_custom_call.1} parent=0
    #allocation2 [shape = 'u8[24576]{0}', space=vmem, size = 0x6000, scoped, tag = 'input window, operand 0']
    #allocation3 [shape = 's32[2]{0}', space=sflag, size = 0x8, scoped, tag = 'scoped memory for tpu_custom_call.1']
    #allocation4 [shape = 's32[2]{0}', space=sflag, size = 0x8, scoped, tag = 'scoped memory for tpu_custom_call.1']
    #allocation5 [shape = 'u8[196608]{0}', space=vmem, size = 0x30000, scoped, tag = 'input window, operand 1, single buffered']
    #allocation6 [shape = 's32[1]{0}', space=sflag, size = 0x4, scoped, tag = 'scoped memory for tpu_custom_call.1']
    #allocation7 [shape = 'u8[16384]{0}', space=vmem, size = 0x4000, scoped, tag = 'output window, operand 0']
    %8 = vsyncpa [#allocation3], 0
    %s9 = scalar_lea.sflag [#allocation3], 1
    %10 = vsyncpa %s9, 0
    %11 = vsyncpa [#allocation6], 0
    %12 = vsyncpa [#allocation4], 0
    %s13 = scalar_lea.sflag [#allocation4], 1
    %14 = vsyncpa %s13, 0
    loop: start=0, step=1, limit=4
    $region2: #{tpu_custom_call.1} parent=1 // loop_pre_header
      _
    $region3: #{tpu_custom_call.1} parent=1 // loop_header
      %s16 = sphi 0, %s20
      %p17 = scmp.ge.s32.totalorder %s16, 4
      %s23 = sphi 0, %s42
      %s24 = sphi 0, %s38
      %s25 = sphi 0, %s34
      %s26 = sphi 0, %s23
      %s27 = sphi 0, %s24
      %s28 = sphi 0, %s25
      %s29 = sphi 0, %s26
      %s30 = sphi 0, %s27
      %s31 = sphi 0, %s28
      %s45 = sphi 0, %s47
      %s48 = sphi 0, %s45
      %s49 = sphi 0, %s48
      %s65 = sphi 0, %s49
      %s71 = sphi 0, %s73
      %s74 = sphi 0, %s71
      %s75 = sphi 0, %s74
      %s91 = sphi 0, %s75
      %s97 = sphi 0, %s99
      %s100 = sphi 0, %s97
      %s101 = sphi 0, %s100
      %s117 = sphi 0, %s101
      %s127 = sphi 0, %s129
      %s130 = sphi 0, %s127
      %s131 = sphi 0, %s130
      %s147 = sphi 0, %s131
    $region4: #{tpu_custom_call.1} parent=1 // loop_header_branch
      %19 = sbr.rel (%p17) target = $region8
    $region5: #{tpu_custom_call.1} parent=1 // loop_body
      %s21 = ssub.s32 %s16, 1
      %s22 = ssub.s32 %s16, 2
      %s32 = sadd.s32 1, %s25
      %p33 = scmp.ge.s32.totalorder %s32, 1
      %s34 = scalar_select %p33, 0, %s32
      %s35 = sadd.s32 1, %s24
      %s36 = scalar_select %p33, %s35, %s24
      %p37 = scmp.ge.s32.totalorder %s36, 2
      %s38 = scalar_select %p37, 0, %s36
      %s39 = sadd.s32 1, %s23
      %s40 = scalar_select %p37, %s39, %s23
      %p41 = scmp.ge.s32.totalorder %s40, 1
      %s42 = scalar_select %p41, 0, %s40
      %s43 = ssub.s32 %s24, %s38
      %p44 = scmp.eq.s32.totalorder %s43, 0
      %s46 = sadd.s32 %s45, 1
      %s47 = scalar_select %p44, %s45, %s46
      %p50 = pneg %p44
      %p51 = scmp.eq.s32.totalorder %s16, 1
      %p52 = por %p50, %p51
      %p53 = scmp.ne.s32.totalorder %s45, %s48
      %p54 = scmp.eq.s32.totalorder %s16, 0
      %p55 = por %p53, %p54
      %p56 = scmp.ne.s32.totalorder %s45, %s48
      %p57 = scmp.eq.s32.totalorder %s21, 1
      %p58 = por %p56, %p57
      %p59 = scmp.ne.s32.totalorder %s48, %s49
      %p60 = scmp.eq.s32.totalorder %s21, 0
      %p61 = por %p59, %p60
      %p62 = scmp.ne.s32.totalorder %s48, %s49
      %p63 = scmp.eq.s32.totalorder %s22, 1
      %p64 = por %p62, %p63
      %p66 = scmp.ne.s32.totalorder %s49, %s65
      %p67 = scmp.eq.s32.totalorder %s22, 0
      %p68 = por %p66, %p67
      %s69 = ssub.s32 %s23, %s42
      %p70 = scmp.eq.s32.totalorder %s69, 0
      %s72 = sadd.s32 %s71, 1
      %s73 = scalar_select %p70, %s71, %s72
      %p76 = pneg %p70
      %p77 = scmp.eq.s32.totalorder %s16, 1
      %p78 = por %p76, %p77
      %p79 = scmp.ne.s32.totalorder %s71, %s74
      %p80 = scmp.eq.s32.totalorder %s16, 0
      %p81 = por %p79, %p80
      %p82 = scmp.ne.s32.totalorder %s71, %s74
      %p83 = scmp.eq.s32.totalorder %s21, 1
      %p84 = por %p82, %p83
      %p85 = scmp.ne.s32.totalorder %s74, %s75
      %p86 = scmp.eq.s32.totalorder %s21, 0
      %p87 = por %p85, %p86
      %p88 = scmp.ne.s32.totalorder %s74, %s75
      %p89 = scmp.eq.s32.totalorder %s22, 1
      %p90 = por %p88, %p89
      %p92 = scmp.ne.s32.totalorder %s75, %s91
      %p93 = scmp.eq.s32.totalorder %s22, 0
      %p94 = por %p92, %p93
      %s95 = ssub.s32 %s23, %s42
      %p96 = scmp.eq.s32.totalorder %s95, 0
      %s98 = sadd.s32 %s97, 1
      %s99 = scalar_select %p96, %s97, %s98
      %p102 = pneg %p96
      %p103 = scmp.eq.s32.totalorder %s16, 1
      %p104 = por %p102, %p103
      %p105 = scmp.ne.s32.totalorder %s97, %s100
      %p106 = scmp.eq.s32.totalorder %s16, 0
      %p107 = por %p105, %p106
      %p108 = scmp.ne.s32.totalorder %s97, %s100
      %p109 = scmp.eq.s32.totalorder %s21, 1
      %p110 = por %p108, %p109
      %p111 = scmp.ne.s32.totalorder %s100, %s101
      %p112 = scmp.eq.s32.totalorder %s21, 0
      %p113 = por %p111, %p112
      %p114 = scmp.ne.s32.totalorder %s100, %s101
      %p115 = scmp.eq.s32.totalorder %s22, 1
      %p116 = por %p114, %p115
      %p118 = scmp.ne.s32.totalorder %s101, %s117
      %p119 = scmp.eq.s32.totalorder %s22, 0
      %p120 = por %p118, %p119
      %s121 = ssub.s32 %s24, %s38
      %s122 = ssub.s32 %s25, %s34
      %s123 = sor.u32 %s121, %s122
      %s124 = ssub.s32 %s23, %s42
      %s125 = sor.u32 %s123, %s124
      %p126 = scmp.eq.s32.totalorder %s125, 0
      %s128 = sadd.s32 %s127, 1
      %s129 = scalar_select %p126, %s127, %s128
      %p132 = pneg %p126
      %p133 = scmp.eq.s32.totalorder %s16, 1
      %p134 = por %p132, %p133
      %p135 = scmp.ne.s32.totalorder %s127, %s130
      %p136 = scmp.eq.s32.totalorder %s16, 0
      %p137 = por %p135, %p136
      %p138 = scmp.ne.s32.totalorder %s127, %s130
      %p139 = scmp.eq.s32.totalorder %s21, 1
      %p140 = por %p138, %p139
      %p141 = scmp.ne.s32.totalorder %s130, %s131
      %p142 = scmp.eq.s32.totalorder %s21, 0
      %p143 = por %p141, %p142
      %p144 = scmp.ne.s32.totalorder %s130, %s131
      %p145 = scmp.eq.s32.totalorder %s22, 1
      %p146 = por %p144, %p145
      %p148 = scmp.ne.s32.totalorder %s131, %s147
      %p149 = scmp.eq.s32.totalorder %s22, 0
      %p150 = por %p148, %p149
      %p151 = scmp.le.s32.totalorder 1, %s16
      %p152 = scmp.lt.s32.totalorder %s16, 3
      %p153 = pnand %p151, %p152
      %p154 = pneg %p153
      // Predicated region
      $region9: #{tpu_custom_call.1} parent=5 // pred_check
        _
      $region10: #{tpu_custom_call.1} parent=5 // pred_check_branch
        %156 = sbr.rel (%p153) target = $region12
      $region11: #{tpu_custom_call.1} parent=5 // pred_region
        %s157 = ssub.s32 %s16, 1
        // Predicated region
        $region13: #{tpu_custom_call.1} parent=11 // pred_check
          %p158 = pneg %p87
        $region14: #{tpu_custom_call.1} parent=11 // pred_check_branch
          %160 = sbr.rel (%p158) target = $region16
        $region15: #{tpu_custom_call.1} parent=11 // pred_region
          %s162 = ssub.s32 6144, 6144
          %163 = vsyncadd [#allocation6], %s162
          %s164 = smul.addr %s26, 128
          %s165 = scalar_lea.hbm %s1, %s164
          %s166 = sshll.u32 [#allocation5], 4
          %s167 = int_to_ptr.vmem [resolvable:$true] %s166
          %172 = dma.hbm_to_vmem [thread:$0]  %s165, 6144, %s167, [#allocation6], 128, 128, 8
        $region16: #{tpu_custom_call.1} parent=11 // pred_fallthru
          _
        // Predicated region
        $region17: #{tpu_custom_call.1} parent=11 // pred_check
          %p173 = pneg %p113
        $region18: #{tpu_custom_call.1} parent=11 // pred_check_branch
          %175 = sbr.rel (%p173) target = $region20
        $region19: #{tpu_custom_call.1} parent=11 // pred_region
          %p176 = scmp.lt.s32.totalorder %s26, 0
          %s177 = scalar_select %p176, %s26, 0
          %s178 = scalar_lea.vmem %s2, %s177
        $region20: #{tpu_custom_call.1} parent=11 // pred_fallthru
          _
      $region12: #{tpu_custom_call.1} parent=5 // pred_fallthru
        _
      %p179 = scmp.lt.s32.totalorder %s16, 2
      // Predicated region
      $region21: #{tpu_custom_call.1} parent=5 // pred_check
        %p180 = pneg %p179
      $region22: #{tpu_custom_call.1} parent=5 // pred_check_branch
        %182 = sbr.rel (%p180) target = $region24
      $region23: #{tpu_custom_call.1} parent=5 // pred_region
        // Predicated region
        $region25: #{tpu_custom_call.1} parent=23 // pred_check
          %p183 = pneg %p55
        $region26: #{tpu_custom_call.1} parent=23 // pred_check_branch
          %185 = sbr.rel (%p183) target = $region28
        $region27: #{tpu_custom_call.1} parent=23 // pred_region
          %s186 = sand.u32 %s45, 1
          %s187 = scalar_lea.sflag [#allocation3], %s186
          %s188 = sand.u32 %s45, 1
          %s189 = smul.addr %s188, 24
          %s190 = scalar_lea.vmem [#allocation2], %s189
          %s192 = ssub.s32 384, 384
          %193 = vsyncadd %s187, %s192
          %s194 = smul.addr %s24, 3
          %s195 = smul.addr %s194, 128
          %s196 = scalar_lea.hbm %s0, %s195
          %s197 = sshll.u32 %s190, 4
          %s198 = int_to_ptr.vmem [resolvable:$true] %s197
          %203 = dma.hbm_to_vmem [thread:$0]  %s196, 384, %s198, %s187, 128, 128, 8
        $region28: #{tpu_custom_call.1} parent=23 // pred_fallthru
          _
      $region24: #{tpu_custom_call.1} parent=5 // pred_fallthru
        _
      %p204 = scmp.le.s32.totalorder 1, %s16
      %p205 = scmp.lt.s32.totalorder %s16, 3
      %p206 = pnand %p204, %p205
      %p207 = pneg %p206
      // Predicated region
      $region29: #{tpu_custom_call.1} parent=5 // pred_check
        _
      $region30: #{tpu_custom_call.1} parent=5 // pred_check_branch
        %209 = sbr.rel (%p206) target = $region32
      $region31: #{tpu_custom_call.1} parent=5 // pred_region
        %s210 = ssub.s32 %s16, 1
        %s211 = sand.u32 %s48, 1
        %s212 = scalar_lea.sflag [#allocation3], %s211
        %s213 = sand.u32 %s48, 1
        %s214 = smul.addr %s213, 24
        %s215 = scalar_lea.vmem [#allocation2], %s214
        // Predicated region
        $region33: #{tpu_custom_call.1} parent=31 // pred_check
          %p216 = pneg %p61
        $region34: #{tpu_custom_call.1} parent=31 // pred_check_branch
          %218 = sbr.rel (%p216) target = $region36
        $region35: #{tpu_custom_call.1} parent=31 // pred_region
          %219 = dma.done %s212, 384
        $region36: #{tpu_custom_call.1} parent=31 // pred_fallthru
          _
        // Predicated region
        $region37: #{tpu_custom_call.1} parent=31 // pred_check
          %p220 = pneg %p87
        $region38: #{tpu_custom_call.1} parent=31 // pred_check_branch
          %222 = sbr.rel (%p220) target = $region40
        $region39: #{tpu_custom_call.1} parent=31 // pred_region
          %223 = dma.done [#allocation6], 6144
        $region40: #{tpu_custom_call.1} parent=31 // pred_fallthru
          _
        %s224 = sand.u32 %s48, 1
        %s225 = scalar_lea.sflag [#allocation3], %s224
        %s226 = sand.u32 %s48, 1
        %s227 = smul.addr %s226, 24
        %s228 = scalar_lea.vmem [#allocation2], %s227
        %p229 = pneg %p61
        %p230 = pneg %p58
        %p231 = pneg %p87
        %p232 = pneg %p84
        %p233 = scmp.lt.s32.totalorder %s26, 0
        %s234 = scalar_select %p233, %s26, 0
        %s235 = scalar_lea.vmem %s2, %s234
        %p236 = pneg %p113
        %p237 = pneg %p110
        %p238 = pneg %p143
        %p239 = pneg %p140
        %s240 = sand.u32 %s130, 1
        %s241 = scalar_lea.sflag [#allocation4], %s240
        %s242 = sand.u32 %s130, 1
        %s243 = smul.addr %s242, 16
        %s244 = scalar_lea.vmem [#allocation7], %s243
        %p245 = scmp.lt.s32.totalorder %s26, 0
        %s246 = scalar_select %p245, %s26, 0
        %s247 = scalar_lea.vmem %s2, %s246
        %s248 = smul.u32 2, %s28
        %s249 = smul.u32 %s28, 16
        %s250 = scalar_lea.vmem %s215, %s249 [#allocation2]
        %v251 = vld [vmem:[%s250] sm:$0xff]
        %v252 = vld [vmem:[%s250 + $0x8] sm:$0xff]
        %v253 = vld [vmem:[%s250 + $0x10] sm:$0xff]
        %v254 = vld [vmem:[#allocation5] sm:$0xff]
        %v255 = vld [vmem:[#allocation5 + $0x8] sm:$0xff]
        %v256 = vld [vmem:[#allocation5 + $0x10] sm:$0xff]
        %v257 = vld [vmem:[#allocation5 + $0x18] sm:$0xff]
        %v258 = vld [vmem:[#allocation5 + $0x20] sm:$0xff]
        %v259 = vld [vmem:[#allocation5 + $0x28] sm:$0xff]
        %v260 = vld [vmem:[#allocation5 + $0x30] sm:$0xff]
        %v261 = vld [vmem:[#allocation5 + $0x38] sm:$0xff]
        %v262 = vld [vmem:[#allocation5 + $0x40] sm:$0xff]
        %v263 = vld [vmem:[#allocation5 + $0x48] sm:$0xff]
        %v264 = vld [vmem:[#allocation5 + $0x50] sm:$0xff]
        %v265 = vld [vmem:[#allocation5 + $0x58] sm:$0xff]
        %v266 = vld [vmem:[#allocation5 + $0x60] sm:$0xff]
        %v267 = vld [vmem:[#allocation5 + $0x68] sm:$0xff]
        %v268 = vld [vmem:[#allocation5 + $0x70] sm:$0xff]
        %v269 = vld [vmem:[#allocation5 + $0x78] sm:$0xff]
        %s270 = scalar_lea.vmem [#allocation5], 128
        %v271 = vld [vmem:[%s270] sm:$0xff]
        %v272 = vld [vmem:[%s270 + $0x8] sm:$0xff]
        %v273 = vld [vmem:[%s270 + $0x10] sm:$0xff]
        %v274 = vld [vmem:[%s270 + $0x18] sm:$0xff]
        %v275 = vld [vmem:[%s270 + $0x20] sm:$0xff]
        %v276 = vld [vmem:[%s270 + $0x28] sm:$0xff]
        %v277 = vld [vmem:[%s270 + $0x30] sm:$0xff]
        %v278 = vld [vmem:[%s270 + $0x38] sm:$0xff]
        %v279 = vld [vmem:[%s270 + $0x40] sm:$0xff]
        %v280 = vld [vmem:[%s270 + $0x48] sm:$0xff]
        %v281 = vld [vmem:[%s270 + $0x50] sm:$0xff]
        %v282 = vld [vmem:[%s270 + $0x58] sm:$0xff]
        %v283 = vld [vmem:[%s270 + $0x60] sm:$0xff]
        %v284 = vld [vmem:[%s270 + $0x68] sm:$0xff]
        %v285 = vld [vmem:[%s270 + $0x70] sm:$0xff]
        %v286 = vld [vmem:[%s270 + $0x78] sm:$0xff]
        %vm290 = vcmask 1046528
        %v291 = vrot.slane %v251, 1
        %v292 = vrot.slane %v252, 1
        %v293 = vsel %vm290, %v291, %v292
        %v294 = vrot.slane %v253, 1
        %v295 = vsel %vm290, %v292, %v294
        %298 = vmatprep.subr.mxu0 0.0
        %299 = vmatpush1.msra.mxu0 %v271
        %300 = vmatprep.subr.mxu0 0.0
        %301 = vmatpush1.msra.mxu0 %v272
        %302 = vmatprep.subr.mxu0 0.0
        %303 = vmatpush1.msra.mxu0 %v273
        %304 = vmatprep.subr.mxu0 0.0
        %305 = vmatpush1.msra.mxu0 %v274
        %306 = vmatprep.subr.mxu0 0.0
        %307 = vmatpush1.msra.mxu0 %v275
        %308 = vmatprep.subr.mxu0 0.0
        %309 = vmatpush1.msra.mxu0 %v276
        %310 = vmatprep.subr.mxu0 0.0
        %311 = vmatpush1.msra.mxu0 %v277
        %312 = vmatprep.subr.mxu0 0.0
        %313 = vmatpush1.msra.mxu0 %v278
        %314 = vmatprep.subr.mxu0 0.0
        %315 = vmatpush1.msra.mxu0 %v279
        %316 = vmatprep.subr.mxu0 0.0
        %317 = vmatpush1.msra.mxu0 %v280
        %318 = vmatprep.subr.mxu0 0.0
        %319 = vmatpush1.msra.mxu0 %v281
        %320 = vmatprep.subr.mxu0 0.0
        %321 = vmatpush1.msra.mxu0 %v282
        %322 = vmatprep.subr.mxu0 0.0
        %323 = vmatpush1.msra.mxu0 %v283
        %324 = vmatprep.subr.mxu0 0.0
        %325 = vmatpush1.msra.mxu0 %v284
        %326 = vmatprep.subr.mxu0 0.0
        %327 = vmatpush1.msra.mxu0 %v285
        %328 = vmatprep.subr.mxu0 0.0
        %329 = vmatpush1.msra.mxu0 %v286
        %330 = vmatprep.subr.mxu0 0.0
        %331 = vmatpush1.msra.mxu0 0.0
        %332 = vmatprep.subr.mxu0 0.0
        %333 = vmatpush1.msra.mxu0 0.0
        %334 = vmatprep.subr.mxu0 0.0
        %335 = vmatpush1.msra.mxu0 0.0
        %336 = vmatprep.subr.mxu0 0.0
        %337 = vmatpush1.msra.mxu0 0.0
        %338 = vmatprep.subr.mxu0 0.0
        %339 = vmatpush1.msra.mxu0 0.0
        %340 = vmatprep.subr.mxu0 0.0
        %341 = vmatpush1.msra.mxu0 0.0
        %342 = vmatprep.subr.mxu0 0.0
        %343 = vmatpush1.msra.mxu0 0.0
        %344 = vmatprep.subr.mxu0 0.0
        %345 = vmatpush1.msra.mxu0 0.0
        %346 = vmatprep.subr.mxu0 0.0
        %347 = vmatpush1.msra.mxu0 0.0
        %348 = vmatprep.subr.mxu0 0.0
        %349 = vmatpush1.msra.mxu0 0.0
        %350 = vmatprep.subr.mxu0 0.0
        %351 = vmatpush1.msra.mxu0 0.0
        %352 = vmatprep.subr.mxu0 0.0
        %353 = vmatpush1.msra.mxu0 0.0
        %354 = vmatprep.subr.mxu0 0.0
        %355 = vmatpush1.msra.mxu0 0.0
        %356 = vmatprep.subr.mxu0 0.0
        %357 = vmatpush1.msra.mxu0 0.0
        %358 = vmatprep.subr.mxu0 0.0
        %359 = vmatpush1.msra.mxu0 0.0
        %360 = vmatprep.subr.mxu0 0.0
        %361 = vmatpush1.msra.mxu0 0.0
        %362 = vmatprep.mubr.f32.mxu0 0.0
        %363 = vmatmul.mubr.f32.gmra.mrb[0].mxu0 %v293
        %v364 = vpop.f32.mrb[0].mxu0
        %v365 = vadd.f32 0.0, %v364
        %v366 = vpop.f32.mrb[0].mxu0
        %367 = vmatprep.mubr.f32.mxu0 0.0
        %368 = vmatmul.mubr.f32.gmra.mrb[0].mxu0 %v295
        %v369 = vpop.f32.mrb[0].mxu0
        %v370 = vadd.f32 0.0, %v369
        %v371 = vpop.f32.mrb[0].mxu0
        %372 = vdwg.mxu0
        %373 = vmatprep.subr.mxu0 0.0
        %374 = vmatpush1.msra.mxu0 %v254
        %375 = vmatprep.subr.mxu0 0.0
        %376 = vmatpush1.msra.mxu0 %v255
        %377 = vmatprep.subr.mxu0 0.0
        %378 = vmatpush1.msra.mxu0 %v256
        %379 = vmatprep.subr.mxu0 0.0
        %380 = vmatpush1.msra.mxu0 %v257
        %381 = vmatprep.subr.mxu0 0.0
        %382 = vmatpush1.msra.mxu0 %v258
        %383 = vmatprep.subr.mxu0 0.0
        %384 = vmatpush1.msra.mxu0 %v259
        %385 = vmatprep.subr.mxu0 0.0
        %386 = vmatpush1.msra.mxu0 %v260
        %387 = vmatprep.subr.mxu0 0.0
        %388 = vmatpush1.msra.mxu0 %v261
        %389 = vmatprep.subr.mxu0 0.0
        %390 = vmatpush1.msra.mxu0 %v262
        %391 = vmatprep.subr.mxu0 0.0
        %392 = vmatpush1.msra.mxu0 %v263
        %393 = vmatprep.subr.mxu0 0.0
        %394 = vmatpush1.msra.mxu0 %v264
        %395 = vmatprep.subr.mxu0 0.0
        %396 = vmatpush1.msra.mxu0 %v265
        %397 = vmatprep.subr.mxu0 0.0
        %398 = vmatpush1.msra.mxu0 %v266
        %399 = vmatprep.subr.mxu0 0.0
        %400 = vmatpush1.msra.mxu0 %v267
        %401 = vmatprep.subr.mxu0 0.0
        %402 = vmatpush1.msra.mxu0 %v268
        %403 = vmatprep.subr.mxu0 0.0
        %404 = vmatpush1.msra.mxu0 %v269
        %405 = vmatprep.subr.mxu0 0.0
        %406 = vmatpush1.msra.mxu0 0.0
        %407 = vmatprep.subr.mxu0 0.0
        %408 = vmatpush1.msra.mxu0 0.0
        %409 = vmatprep.subr.mxu0 0.0
        %410 = vmatpush1.msra.mxu0 0.0
        %411 = vmatprep.subr.mxu0 0.0
        %412 = vmatpush1.msra.mxu0 0.0
        %413 = vmatprep.subr.mxu0 0.0
        %414 = vmatpush1.msra.mxu0 0.0
        %415 = vmatprep.subr.mxu0 0.0
        %416 = vmatpush1.msra.mxu0 0.0
        %417 = vmatprep.subr.mxu0 0.0
        %418 = vmatpush1.msra.mxu0 0.0
        %419 = vmatprep.subr.mxu0 0.0
        %420 = vmatpush1.msra.mxu0 0.0
        %421 = vmatprep.subr.mxu0 0.0
        %422 = vmatpush1.msra.mxu0 0.0
        %423 = vmatprep.subr.mxu0 0.0
        %424 = vmatpush1.msra.mxu0 0.0
        %425 = vmatprep.subr.mxu0 0.0
        %426 = vmatpush1.msra.mxu0 0.0
        %427 = vmatprep.subr.mxu0 0.0
        %428 = vmatpush1.msra.mxu0 0.0
        %429 = vmatprep.subr.mxu0 0.0
        %430 = vmatpush1.msra.mxu0 0.0
        %431 = vmatprep.subr.mxu0 0.0
        %432 = vmatpush1.msra.mxu0 0.0
        %433 = vmatprep.subr.mxu0 0.0
        %434 = vmatpush1.msra.mxu0 0.0
        %435 = vmatprep.subr.mxu0 0.0
        %436 = vmatpush1.msra.mxu0 0.0
        %437 = vmatprep.mubr.f32.mxu0 0.0
        %438 = vmatmul.mubr.f32.gmra.mrb[0].mxu0 %v251
        %v439 = vpop.f32.mrb[0].mxu0
        %v440 = vadd.f32 %v365, %v439
        %v441 = vpop.f32.mrb[0].mxu0
        %442 = vmatprep.mubr.f32.mxu0 0.0
        %443 = vmatmul.mubr.f32.gmra.mrb[0].mxu0 %v252
        %v444 = vpop.f32.mrb[0].mxu0
        %v445 = vadd.f32 %v370, %v444
        %v446 = vpop.f32.mrb[0].mxu0
        %447 = vdwg.mxu0
        %s448 = scalar_lea.vmem [#allocation5], 256
        %v449 = vld [vmem:[%s448] sm:$0xff]
        %v450 = vld [vmem:[%s448 + $0x8] sm:$0xff]
        %v451 = vld [vmem:[%s448 + $0x10] sm:$0xff]
        %v452 = vld [vmem:[%s448 + $0x18] sm:$0xff]
        %v453 = vld [vmem:[%s448 + $0x20] sm:$0xff]
        %v454 = vld [vmem:[%s448 + $0x28] sm:$0xff]
        %v455 = vld [vmem:[%s448 + $0x30] sm:$0xff]
        %v456 = vld [vmem:[%s448 + $0x38] sm:$0xff]
        %v457 = vld [vmem:[%s448 + $0x40] sm:$0xff]
        %v458 = vld [vmem:[%s448 + $0x48] sm:$0xff]
        %v459 = vld [vmem:[%s448 + $0x50] sm:$0xff]
        %v460 = vld [vmem:[%s448 + $0x58] sm:$0xff]
        %v461 = vld [vmem:[%s448 + $0x60] sm:$0xff]
        %v462 = vld [vmem:[%s448 + $0x68] sm:$0xff]
        %v463 = vld [vmem:[%s448 + $0x70] sm:$0xff]
        %v464 = vld [vmem:[%s448 + $0x78] sm:$0xff]
        %vm465 = vcmask 1045504
        %v466 = vrot.slane %v251, 2
        %v467 = vrot.slane %v252, 2
        %v468 = vsel %vm465, %v466, %v467
        %v469 = vrot.slane %v253, 2
        %v470 = vsel %vm465, %v467, %v469
        %473 = vmatprep.subr.mxu0 0.0
        %474 = vmatpush1.msra.mxu0 %v449
        %475 = vmatprep.subr.mxu0 0.0
        %476 = vmatpush1.msra.mxu0 %v450
        %477 = vmatprep.subr.mxu0 0.0
        %478 = vmatpush1.msra.mxu0 %v451
        %479 = vmatprep.subr.mxu0 0.0
        %480 = vmatpush1.msra.mxu0 %v452
        %481 = vmatprep.subr.mxu0 0.0
        %482 = vmatpush1.msra.mxu0 %v453
        %483 = vmatprep.subr.mxu0 0.0
        %484 = vmatpush1.msra.mxu0 %v454
        %485 = vmatprep.subr.mxu0 0.0
        %486 = vmatpush1.msra.mxu0 %v455
        %487 = vmatprep.subr.mxu0 0.0
        %488 = vmatpush1.msra.mxu0 %v456
        %489 = vmatprep.subr.mxu0 0.0
        %490 = vmatpush1.msra.mxu0 %v457
        %491 = vmatprep.subr.mxu0 0.0
        %492 = vmatpush1.msra.mxu0 %v458
        %493 = vmatprep.subr.mxu0 0.0
        %494 = vmatpush1.msra.mxu0 %v459
        %495 = vmatprep.subr.mxu0 0.0
        %496 = vmatpush1.msra.mxu0 %v460
        %497 = vmatprep.subr.mxu0 0.0
        %498 = vmatpush1.msra.mxu0 %v461
        %499 = vmatprep.subr.mxu0 0.0
        %500 = vmatpush1.msra.mxu0 %v462
        %501 = vmatprep.subr.mxu0 0.0
        %502 = vmatpush1.msra.mxu0 %v463
        %503 = vmatprep.subr.mxu0 0.0
        %504 = vmatpush1.msra.mxu0 %v464
        %505 = vmatprep.subr.mxu0 0.0
        %506 = vmatpush1.msra.mxu0 0.0
        %507 = vmatprep.subr.mxu0 0.0
        %508 = vmatpush1.msra.mxu0 0.0
        %509 = vmatprep.subr.mxu0 0.0
        %510 = vmatpush1.msra.mxu0 0.0
        %511 = vmatprep.subr.mxu0 0.0
        %512 = vmatpush1.msra.mxu0 0.0
        %513 = vmatprep.subr.mxu0 0.0
        %514 = vmatpush1.msra.mxu0 0.0
        %515 = vmatprep.subr.mxu0 0.0
        %516 = vmatpush1.msra.mxu0 0.0
        %517 = vmatprep.subr.mxu0 0.0
        %518 = vmatpush1.msra.mxu0 0.0
        %519 = vmatprep.subr.mxu0 0.0
        %520 = vmatpush1.msra.mxu0 0.0
        %521 = vmatprep.subr.mxu0 0.0
        %522 = vmatpush1.msra.mxu0 0.0
        %523 = vmatprep.subr.mxu0 0.0
        %524 = vmatpush1.msra.mxu0 0.0
        %525 = vmatprep.subr.mxu0 0.0
        %526 = vmatpush1.msra.mxu0 0.0
        %527 = vmatprep.subr.mxu0 0.0
        %528 = vmatpush1.msra.mxu0 0.0
        %529 = vmatprep.subr.mxu0 0.0
        %530 = vmatpush1.msra.mxu0 0.0
        %531 = vmatprep.subr.mxu0 0.0
        %532 = vmatpush1.msra.mxu0 0.0
        %533 = vmatprep.subr.mxu0 0.0
        %534 = vmatpush1.msra.mxu0 0.0
        %535 = vmatprep.subr.mxu0 0.0
        %536 = vmatpush1.msra.mxu0 0.0
        %537 = vmatprep.mubr.f32.mxu0 0.0
        %538 = vmatmul.mubr.f32.gmra.mrb[0].mxu0 %v468
        %v539 = vpop.f32.mrb[0].mxu0
        %v540 = vadd.f32 0.0, %v539
        %v541 = vpop.f32.mrb[0].mxu0
        %542 = vmatprep.mubr.f32.mxu0 0.0
        %543 = vmatmul.mubr.f32.gmra.mrb[0].mxu0 %v470
        %v544 = vpop.f32.mrb[0].mxu0
        %v545 = vadd.f32 0.0, %v544
        %v546 = vpop.f32.mrb[0].mxu0
        %547 = vdwg.mxu0
        %v548 = vadd.f32 %v440, %v540
        %v549 = vadd.f32 %v445, %v545
        %v550 = vld [vmem:[%s247] sm:$0x1]
        %v552 = vlaneseq
        %v553 = vshrl.u32 %v552, 7
        %v554 = vsub.s32 0, %v553
        %v555 = vrot.slane %v550, %v554
        %v557 = vadd.f32 %v548, %v555
        %v558 = vadd.f32 %v549, %v555
        %559 = vst [vmem:[%s244] sm:$0xff] %v557
        %560 = vst [vmem:[%s244 + $0x8] sm:$0xff] %v558
        %s561 = sand.u32 %s130, 1
        %s562 = scalar_lea.sflag [#allocation4], %s561
        %s563 = sand.u32 %s130, 1
        %s564 = smul.addr %s563, 16
        %s565 = scalar_lea.vmem [#allocation7], %s564
        // Predicated region
        $region41: #{tpu_custom_call.1} parent=31 // pred_check
          %p566 = pneg %p140
        $region42: #{tpu_custom_call.1} parent=31 // pred_check_branch
          %568 = sbr.rel (%p566) target = $region44
        $region43: #{tpu_custom_call.1} parent=31 // pred_region
          %s569 = smul.u32 2, %s28
          %s571 = ssub.s32 256, 256
          %572 = vsyncadd %s562, %s571
          %s573 = sadd.s32 %s26, %s569
          %s574 = smul.addr %s27, 2
          %s575 = sadd.s32 %s573, %s574
          %s576 = smul.addr %s575, 128
          %s577 = scalar_lea.hbm %s3, %s576
          %s578 = sshll.u32 %s565, 4
          %s579 = int_to_ptr.vmem [resolvable:$true] %s578
          %584 = dma.vmem_to_hbm [thread:$0]  %s579, 256, %s577, %s562, 128, 128, 8
        $region44: #{tpu_custom_call.1} parent=31 // pred_fallthru
          _
      $region32: #{tpu_custom_call.1} parent=5 // pred_fallthru
        _
      %p585 = scmp.le.s32.totalorder 2, %s16
      // Predicated region
      $region45: #{tpu_custom_call.1} parent=5 // pred_check
        %p586 = pneg %p585
      $region46: #{tpu_custom_call.1} parent=5 // pred_check_branch
        %588 = sbr.rel (%p586) target = $region48
      $region47: #{tpu_custom_call.1} parent=5 // pred_region
        %s589 = ssub.s32 %s16, 2
        // Predicated region
        $region49: #{tpu_custom_call.1} parent=47 // pred_check
          %p590 = pneg %p146
        $region50: #{tpu_custom_call.1} parent=47 // pred_check_branch
          %592 = sbr.rel (%p590) target = $region52
        $region51: #{tpu_custom_call.1} parent=47 // pred_region
          %s593 = sand.u32 %s131, 1
          %s594 = scalar_lea.sflag [#allocation4], %s593
          %s595 = sand.u32 %s131, 1
          %s596 = smul.addr %s595, 16
          %s597 = scalar_lea.vmem [#allocation7], %s596
          %598 = dma.done %s594, 256
        $region52: #{tpu_custom_call.1} parent=47 // pred_fallthru
          _
      $region48: #{tpu_custom_call.1} parent=5 // pred_fallthru
        _
    $region6: #{tpu_custom_call.1} parent=1 // loop_footer
      %s20 = sadd.s32 1, %s16
    $region7: #{tpu_custom_call.1} parent=1 // loop_footer_branch
      %15 = sbr.rel target = $region3
    $region8: #{tpu_custom_call.1} parent=1 // loop_exit
      _
    %599 = vsyncpa [#allocation3], 1
    %s600 = scalar_lea.sflag [#allocation3], 1
    %601 = vsyncpa %s600, 1
    %602 = vsyncpa [#allocation6], 1
    %603 = vsyncpa [#allocation4], 1
    %s604 = scalar_lea.sflag [#allocation4], 1
    %605 = vsyncpa %s604, 1

</llo_original>
